<compile_context>
chip_gen: v5e
topology: v5e:2x2
jax: 0.10.0
libtpu: 0.0.40
codegen_flags: <defaults>
</compile_context>

<pallas_src>
import jax
import jax.numpy as jnp
from jax.experimental import pallas as pl
from jax.experimental.pallas import tpu as pltpu


_NBUF = 4                          # max DMAs in flight (semaphore slots)
_CHUNK_TARGET_BYTES = 8 << 20      # ~8 MiB per DMA descriptor
_MIN_SPLIT_BYTES = 1 << 20         # only bother chunking copies >= 1 MiB


def _choose_chunk_rows(dim0: int, bytes_per_row: int, total_bytes: int) -> int:
    """Rows (along axis 0) per DMA chunk."""
    if dim0 <= 1:
        return max(dim0, 1)
    chunk = max(1, _CHUNK_TARGET_BYTES // max(bytes_per_row, 1))
    if total_bytes >= _MIN_SPLIT_BYTES:
        # Large copy: guarantee >= _NBUF chunks so multiple DMA engines overlap.
        chunk = min(chunk, max(1, pl.cdiv(dim0, _NBUF)))
    return min(chunk, dim0)


def _make_dma_copy_kernel(dim0: int, chunk: int, nbuf: int):
    """Kernel: chunked HBM->HBM DMA copy with up to `nbuf` DMAs in flight."""
    n_chunks = max(1, pl.cdiv(dim0, chunk))

    def kernel(x_hbm, o_hbm, sems):
        if n_chunks == 1:
            cp = pltpu.make_async_copy(x_hbm, o_hbm, sems.at[0])
            cp.start()
            cp.wait()
            return
        copies = []
        for c in range(n_chunks):          # static unroll at trace time
            start = c * chunk
            rows = min(chunk, dim0 - start)
            cp = pltpu.make_async_copy(
                x_hbm.at[pl.ds(start, rows)],
                o_hbm.at[pl.ds(start, rows)],
                sems.at[c % nbuf],
            )
            if c >= nbuf:
                # Free the semaphore slot we are about to reuse.
                copies[c - nbuf].wait()
            cp.start()
            copies.append(cp)
        for cp in copies[max(0, n_chunks - nbuf):]:
            cp.wait()

    return kernel


def identity_copy(x: jax.Array) -> jax.Array:
    """Materialize y = x into a fresh HBM buffer via a DMA-driven Pallas copy."""
    if x.ndim == 0 or x.size == 0:
        # Degenerate inputs: nothing worth tiling / DMA'ing.
        return jnp.copy(x)

    itemsize = jnp.dtype(x.dtype).itemsize
    total_bytes = int(x.size) * itemsize
    dim0 = int(x.shape[0])
    bytes_per_row = total_bytes // max(dim0, 1)
    chunk = _choose_chunk_rows(dim0, bytes_per_row, total_bytes)

    kernel = _make_dma_copy_kernel(dim0, chunk, _NBUF)

    return pl.pallas_call(
        kernel,
        out_shape=jax.ShapeDtypeStruct(x.shape, x.dtype),
        in_specs=[pl.BlockSpec(memory_space=pl.ANY)],
        out_specs=pl.BlockSpec(memory_space=pl.ANY),
        scratch_shapes=[pltpu.SemaphoreType.DMA((_NBUF,))],
        # Pure memory traffic: let XLA's scheduler overlap it with neighbors.
        cost_estimate=pl.CostEstimate(
            flops=0, transcendentals=0, bytes_accessed=2 * total_bytes),
    )(x)


def identity_projection(x: jax.Array, *, materialize: bool = False) -> jax.Array:
    """Pallas implementation of IdentityProjection.forward (y = x).

    Default (materialize=False): return x — a no-op alias, zero HBM traffic,
    which is the semantically correct and fastest lowering of an identity.
    materialize=True: produce a fresh buffer via the DMA copy kernel.
    """
    if not materialize:
        return x
    return identity_copy(x)


class IdentityProjection:
    """Mirror of the PyTorch module (forward: y = x)."""

    def __init__(self, input_dim: int):
        self.input_dim = input_dim

    @property
    def proj_dim(self) -> int:
        return self.input_dim

    def __call__(self, x: jax.Array, *, materialize: bool = False) -> jax.Array:
        return identity_projection(x, materialize=materialize)


if __name__ == "__main__":
    key = jax.random.PRNGKey(0)

    # NCHW input consistent with an objdetect projection layer (input_dim=4).
    x = jax.random.normal(key, (2, 4, 16, 16), dtype=jnp.float32)

    proj = IdentityProjection(input_dim=4)
    assert proj.proj_dim == 4

    # Fast path: identity is a no-op, the right lowering is to alias x.
    y_alias = proj(x)
    assert y_alias is x

    # Materialized path: fresh buffer filled by the DMA-copy Pallas kernel.
    y = jax.block_until_ready(proj(x, materialize=True))
    assert y.shape == x.shape and y.dtype == x.dtype
    assert bool(jnp.array_equal(y, x)), "identity copy mismatch"

    # Non-128-aligned shape: the DMA path has no lane-alignment requirement,
    # so no pad + copy + slice fallback is needed anymore.
    k1, k2 = jax.random.split(key)
    x_odd = jax.random.normal(k1, (3, 5, 7), dtype=jnp.float32)
    y_odd = jax.block_until_ready(identity_copy(x_odd))
    assert y_odd.shape == x_odd.shape
    assert bool(jnp.array_equal(y_odd, x_odd)), "odd-shape copy mismatch"

    # ~2 MiB input exercises the chunked multi-DMA (4 in-flight sems) path.
    x_big = jax.random.normal(k2, (512, 1024), dtype=jnp.float32)
    y_big = jax.block_until_ready(identity_copy(x_big))
    assert bool(jnp.array_equal(y_big, x_big)), "chunked copy mismatch"

    print("KERNEL_OK")
</pallas_src>

<mosaic_0001>
module attributes {stable_mosaic.version = 11 : i64} {
  func.func @kernel(%arg0: memref<2x4x16x16xf32, #tpu.memory_space<any>>, %arg1: memref<2x4x16x16xf32, #tpu.memory_space<any>>, %arg2: memref<4x!tpu.dma_semaphore, #tpu.memory_space<semaphore_mem>>) attributes {dimension_semantics = [], scalar_prefetch = 0 : i64, scratch_operands = 1 : i64, tpu.core_type = #tpu.core_type<tc>} {
    %c0_i32 = arith.constant 0 : i32
    %0 = tpu.memref_slice %arg2[%c0_i32] : memref<4x!tpu.dma_semaphore, #tpu.memory_space<semaphore_mem>> -> memref<1x!tpu.dma_semaphore, #tpu.memory_space<semaphore_mem>>
    %1 = tpu.memref_squeeze %0 : memref<1x!tpu.dma_semaphore, #tpu.memory_space<semaphore_mem>> -> memref<!tpu.dma_semaphore, #tpu.memory_space<semaphore_mem>>
    tpu.enqueue_dma source(%arg0 : memref<2x4x16x16xf32, #tpu.memory_space<any>>) target(%arg1 : memref<2x4x16x16xf32, #tpu.memory_space<any>>) target_semaphore(%1 : memref<!tpu.dma_semaphore, #tpu.memory_space<semaphore_mem>>)
    %c0_i32_0 = arith.constant 0 : i32
    %2 = tpu.memref_slice %arg2[%c0_i32_0] : memref<4x!tpu.dma_semaphore, #tpu.memory_space<semaphore_mem>> -> memref<1x!tpu.dma_semaphore, #tpu.memory_space<semaphore_mem>>
    %3 = tpu.memref_squeeze %2 : memref<1x!tpu.dma_semaphore, #tpu.memory_space<semaphore_mem>> -> memref<!tpu.dma_semaphore, #tpu.memory_space<semaphore_mem>>
    tpu.wait_dma2 semaphore(%3 : memref<!tpu.dma_semaphore, #tpu.memory_space<semaphore_mem>>) src(%arg0 : memref<2x4x16x16xf32, #tpu.memory_space<any>>) dst(%arg1 : memref<2x4x16x16xf32, #tpu.memory_space<any>>)
    return
  }
}

</mosaic_0001>

<llo_original>
// kernel: tpu_custom_call.1
$region0: #{tpu_custom_call.1}
  #allocation0 [shape = 'u32[]', space=smem, size = 0x4, offset = 0x4, fixed_abs, tag = 'smem constant byte address 0x4 - core index']
  #allocation1 [shape = 'u32[72,128]{1,0:T(1,128)}', space=vmem, size = 0x9000, scoped, tag = 'internal scratch']
  #allocation2 [shape = 's32[4]{0}', space=sflag, size = 0x10, scoped, tag = 'scratch operand']
  #allocation3 [shape = 's32[]', space=sflag, size = 0x4, offset = 0, fixed_abs, tag = 'sflag constant byte address 0x0 - dummy sync flag']
  #allocation4 [shape = 'u32[0]{0}', space=smem, size = 0, offset = 0, fixed_abs, tag = 'smem constant byte address 0x0 - null']
  %s0 = inlined_call_operand.hbm [shape: f32[2,4,16,16], index: 0, kind: input, shape index: {}]
  %s1 = inlined_call_operand.hbm [shape: f32[2,4,16,16], index: 1, kind: output, shape index: {}]
  %s2 = sld [smem:[#allocation0]]
  $region2: #{tpu_custom_call.1} parent=0
    _
  %s4 = ssub.s32 1, %s2
  %s5 = scalar_select 0, %s4, %s2
  %s7 = sshll.u32 1, 14
  %s8 = sxor.u32 4294967295, %s7
  %s10 = sshll.u32 %s0, 4
  %s11 = int_to_ptr.hbm [resolvable:$true] %s10
  %s12 = sshll.u32 %s1, 4
  %s13 = int_to_ptr.hbm [resolvable:$true] %s12
  %16 = dma.general %s11, 2048, %s13, [#allocation2], [#allocation3], [#allocation4], 0, 0
  %s17 = smul.u32 2, 4
  %s18 = smul.u32 %s17, 16
  %s19 = smul.u32 %s18, 1
  %s20 = sshll.u32 %s19, 4
  %21 = dma.done [#allocation2], %s20
  %22 = vsyncmov [#allocation2]
  %s23 = vpop.sfrf %22
  %p24 = scmp.eq.s32.totalorder %s23, 0
  %p25 = pneg %p24
  %27 = shalt.err (%p25)
  %s28 = scalar_lea.sflag [#allocation2], 1
  %29 = vsyncmov %s28
  %s30 = vpop.sfrf %29
  %p31 = scmp.eq.s32.totalorder %s30, 0
  %p32 = pneg %p31
  %34 = shalt.err (%p32)
  %s35 = scalar_lea.sflag [#allocation2], 2
  %36 = vsyncmov %s35
  %s37 = vpop.sfrf %36
  %p38 = scmp.eq.s32.totalorder %s37, 0
  %p39 = pneg %p38
  %41 = shalt.err (%p39)
  %s42 = scalar_lea.sflag [#allocation2], 3
  %43 = vsyncmov %s42
  %s44 = vpop.sfrf %43
  %p45 = scmp.eq.s32.totalorder %s44, 0
  %p46 = pneg %p45
  %48 = shalt.err (%p46)

</llo_original>
